<compile_context>
chip_gen: v7x
topology: tpu7x:2x2x1
jax: 0.10.0
libtpu: 0.0.40
codegen_flags: <defaults>
</compile_context>

<pallas_src>
import math
import jax
import jax.numpy as jnp
from jax import lax
from jax.experimental import pallas as pl
from jax.experimental.pallas import tpu as pltpu

_VMEM_LIMIT = 48 * 1024 * 1024  # headroom under v7x's 64 MiB physical VMEM


# ----------------------------------------------------------------------------
# helpers
# ----------------------------------------------------------------------------
def _pick_block_batch(b, rows_per_item):
    """Batch items per grid step: target ~256 MXU rows, but keep >=2 grid steps
    when B >= 2 so the second TensorCore (v7x) has work and DMAs pipeline."""
    bb = max(1, min(b, max(1, 256 // max(1, rows_per_item))))
    if b >= 2:
        bb = max(1, min(bb, b // 2))
    while b % bb:
        bb -= 1
    return bb


def _pick_vocab_tile(v):
    for cand in (1024, 512, 256, 128):
        if v % cand == 0:
            return cand
    return v


_INVARIANT = pl.Buffered(1)  # single buffer for grid-invariant blocks


# ----------------------------------------------------------------------------
# Decoder attention kernel: one attention layer over [memory ; x] (residual out)
# ----------------------------------------------------------------------------
def _dec_attn_kernel(x_ref, mem_ref, wq_ref, wk_ref, wv_ref, wo_ref, h_ref):
    BB, S, H = x_ref.shape
    M = mem_ref.shape[1]

    x = x_ref[...]                                   # (BB, S, H) bf16
    mem = mem_ref[...].astype(jnp.bfloat16)          # (BB, M, H) f32 -> bf16 in-kernel
    wq = wq_ref[...]
    wk = wk_ref[...]
    wv = wv_ref[...]
    wo = wo_ref[...]

    scale = 1.0 / math.sqrt(H)

    # flatten batch*rows so projections present BB*S (resp. BB*M) sublanes
    x2 = x.reshape(BB * S, H)
    mem2 = mem.reshape(BB * M, H)

    # projections: bf16 operands, f32 accumulation; scale folded into q
    q = (jnp.dot(x2, wq, preferred_element_type=jnp.float32)
         * scale).astype(jnp.bfloat16)
    k_x = jnp.dot(x2, wk, preferred_element_type=jnp.float32).astype(jnp.bfloat16)
    v_x = jnp.dot(x2, wv, preferred_element_type=jnp.float32).astype(jnp.bfloat16)
    k_m = jnp.dot(mem2, wk, preferred_element_type=jnp.float32).astype(jnp.bfloat16)
    v_m = jnp.dot(mem2, wv, preferred_element_type=jnp.float32).astype(jnp.bfloat16)

    q3 = q.reshape(BB, S, H)
    k_x3 = k_x.reshape(BB, S, H)
    v_x3 = v_x.reshape(BB, S, H)
    k_m3 = k_m.reshape(BB, M, H)
    v_m3 = v_m.reshape(BB, M, H)

    # scores in two column blocks (no concatenate copy); contract hidden axis
    # directly so no transpose of K is materialized.
    s_m = lax.dot_general(q3, k_m3, (((2,), (2,)), ((0,), (0,))),
                          preferred_element_type=jnp.float32)      # (BB, S, M)
    s_x = lax.dot_general(q3, k_x3, (((2,), (2,)), ((0,), (0,))),
                          preferred_element_type=jnp.float32)      # (BB, S, S)

    # memory positions are always visible; token positions are causally masked
    row = lax.broadcasted_iota(jnp.int32, (S, S), 0)
    col = lax.broadcasted_iota(jnp.int32, (S, S), 1)
    s_x = jnp.where((col <= row)[None], s_x, -1e30)                # f32 scores

    # softmax over the two blocks jointly (f32)
    m = jnp.maximum(jnp.max(s_m, axis=-1, keepdims=True),
                    jnp.max(s_x, axis=-1, keepdims=True))
    p_m = jnp.exp(s_m - m)
    p_x = jnp.exp(s_x - m)
    l = jnp.sum(p_m, axis=-1, keepdims=True) + jnp.sum(p_x, axis=-1, keepdims=True)
    inv_l = pl.reciprocal(l, approx=True)

    attn = (lax.dot_general(p_m.astype(jnp.bfloat16), v_m3,
                            (((2,), (1,)), ((0,), (0,))),
                            preferred_element_type=jnp.float32)
            + lax.dot_general(p_x.astype(jnp.bfloat16), v_x3,
                              (((2,), (1,)), ((0,), (0,))),
                              preferred_element_type=jnp.float32)) * inv_l

    # output projection + residual (residual add in f32)
    attn2 = attn.reshape(BB * S, H).astype(jnp.bfloat16)
    o = jnp.dot(attn2, wo, preferred_element_type=jnp.float32).reshape(BB, S, H)
    h_ref[...] = (x.astype(jnp.float32) + o).astype(jnp.bfloat16)


def decoder_attention(x, memory, wq, wk, wv, wo):
    """x: (B,S,H) bf16, memory: (B,M,H) f32 -> hidden (B,S,H) bf16."""
    B, S, H = x.shape
    M = memory.shape[1]
    BB = _pick_block_batch(B, S)

    flops = 2 * B * (S * H * H * 2 + (S + M) * H * H * 2) \
        + 4 * B * S * (S + M) * H
    cost = pl.CostEstimate(
        flops=int(flops),
        transcendentals=int(B * S * (S + M)),
        bytes_accessed=int(2 * B * S * H + 4 * B * M * H
                           + 4 * H * H * 2 + 2 * B * S * H))

    w_spec = pl.BlockSpec((H, H), lambda i: (0, 0), pipeline_mode=_INVARIANT)

    return pl.pallas_call(
        _dec_attn_kernel,
        out_shape=jax.ShapeDtypeStruct((B, S, H), jnp.bfloat16),
        grid_spec=pltpu.PrefetchScalarGridSpec(
            num_scalar_prefetch=0,
            grid=(B // BB,),
            in_specs=[
                pl.BlockSpec((BB, S, H), lambda i: (i, 0, 0)),
                pl.BlockSpec((BB, M, H), lambda i: (i, 0, 0)),
                w_spec, w_spec, w_spec, w_spec,
            ],
            out_specs=pl.BlockSpec((BB, S, H), lambda i: (i, 0, 0)),
        ),
        compiler_params=pltpu.CompilerParams(
            dimension_semantics=("parallel",),
            vmem_limit_bytes=_VMEM_LIMIT),
        cost_estimate=cost,
    )(x, memory, wq, wk, wv, wo)


# ----------------------------------------------------------------------------
# LM head kernel: (R, H) x (V, H)^T tiled over the vocab axis
# ----------------------------------------------------------------------------
def _lmhead_kernel(h_ref, wemb_ref, logits_ref):
    h = h_ref[...]                    # (TR, H) bf16
    w = wemb_ref[...]                 # (TV, H) bf16
    # contract hidden axes directly — no transpose of the embedding tile
    logits_ref[...] = lax.dot_general(
        h, w, (((1,), (1,)), ((), ())), preferred_element_type=jnp.float32)


def lm_head(h2d, w_emb):
    """h2d: (R,H) bf16, w_emb: (V,H) bf16 -> logits (R,V) f32."""
    R0, H = h2d.shape
    V = w_emb.shape[0]
    TV = _pick_vocab_tile(V)

    # row tile: 256/512-row MXU target on v6e/v7x; pad R up to a tile multiple
    # instead of degrading to TR=R (VMEM hazard for large, non-divisible R).
    if R0 <= 512:
        TR, pad = R0, 0
    else:
        TR = 512 if R0 % 512 == 0 else 256
        pad = (-R0) % TR
    h_p = jnp.pad(h2d, ((0, pad), (0, 0))) if pad else h2d
    R = R0 + pad

    cost = pl.CostEstimate(
        flops=int(2 * R * V * H),
        transcendentals=0,
        bytes_accessed=int(2 * R * H + 2 * V * H * (R // TR) + 4 * R * V))

    # TODO(synk): emit bf16 logits (halves R*V writeback) if the consumer
    # tolerates it; kept f32 for parity with the reference LM head.
    out = pl.pallas_call(
        _lmhead_kernel,
        out_shape=jax.ShapeDtypeStruct((R, V), jnp.float32),
        grid_spec=pltpu.PrefetchScalarGridSpec(
            num_scalar_prefetch=0,
            grid=(R // TR, V // TV),
            in_specs=[
                pl.BlockSpec((TR, H), lambda r, v: (r, 0)),
                pl.BlockSpec((TV, H), lambda r, v: (v, 0)),
            ],
            out_specs=pl.BlockSpec((TR, TV), lambda r, v: (r, v)),
        ),
        compiler_params=pltpu.CompilerParams(
            dimension_semantics=("parallel", "parallel"),
            vmem_limit_bytes=_VMEM_LIMIT),
        cost_estimate=cost,
    )(h_p, w_emb)
    return out[:R0] if pad else out


# ----------------------------------------------------------------------------
# Encoder kernel (update_memory): beacon-query attention + forget gate
# ----------------------------------------------------------------------------
def _encoder_kernel(x_ref, mem_ref, q_ref, gate_ref, wk_ref, wv_ref, newmem_ref):
    BB, C, H = x_ref.shape

    x = x_ref[...]                    # (BB, C, H) bf16 chunk embeddings
    mem_f32 = mem_ref[...]            # (BB, C, H) f32 old memory
    q = q_ref[...]                    # (C, H) bf16   (beacon @ wq) * 1/sqrt(H), hoisted
    gate = gate_ref[...]              # (C, H) f32    sigmoid(forget), hoisted

    wk = wk_ref[...]
    wv = wv_ref[...]

    mem_bf = mem_f32.astype(jnp.bfloat16)
    x2 = x.reshape(BB * C, H)
    mem2 = mem_bf.reshape(BB * C, H)

    k_m = jnp.dot(mem2, wk, preferred_element_type=jnp.float32
                  ).astype(jnp.bfloat16).reshape(BB, C, H)
    v_m = jnp.dot(mem2, wv, preferred_element_type=jnp.float32
                  ).astype(jnp.bfloat16).reshape(BB, C, H)
    k_x = jnp.dot(x2, wk, preferred_element_type=jnp.float32
                  ).astype(jnp.bfloat16).reshape(BB, C, H)
    v_x = jnp.dot(x2, wv, preferred_element_type=jnp.float32
                  ).astype(jnp.bfloat16).reshape(BB, C, H)

    q3 = jnp.broadcast_to(q[None], (BB, C, H))

    # scores over [memory ; chunk] in two blocks (no concatenate)
    s_m = lax.dot_general(q3, k_m, (((2,), (2,)), ((0,), (0,))),
                          preferred_element_type=jnp.float32)       # (BB, C, C)
    s_x = lax.dot_general(q3, k_x, (((2,), (2,)), ((0,), (0,))),
                          preferred_element_type=jnp.float32)       # (BB, C, C)

    m = jnp.maximum(jnp.max(s_m, axis=-1, keepdims=True),
                    jnp.max(s_x, axis=-1, keepdims=True))
    p_m = jnp.exp(s_m - m)
    p_x = jnp.exp(s_x - m)
    l = jnp.sum(p_m, axis=-1, keepdims=True) + jnp.sum(p_x, axis=-1, keepdims=True)
    inv_l = pl.reciprocal(l, approx=True)

    compressed = (lax.dot_general(p_m.astype(jnp.bfloat16), v_m,
                                  (((2,), (1,)), ((0,), (0,))),
                                  preferred_element_type=jnp.float32)
                  + lax.dot_general(p_x.astype(jnp.bfloat16), v_x,
                                    (((2,), (1,)), ((0,), (0,))),
                                    preferred_element_type=jnp.float32)) * inv_l

    g = gate[None]                                                  # (1, C, H) f32
    newmem_ref[...] = g * mem_f32 + (1.0 - g) * compressed


def update_memory(x_chunk, memory, q_beacon, gate, wk, wv):
    """x_chunk: (B,C,H) bf16, memory: (B,C,H) f32 -> updated memory (B,C,H) f32."""
    B, C, H = x_chunk.shape
    BB = _pick_block_batch(B, C)

    flops = 2 * B * (2 * C * H * H * 2) + 8 * B * C * C * H
    cost = pl.CostEstimate(
        flops=int(flops),
        transcendentals=int(B * C * 2 * C),
        bytes_accessed=int(2 * B * C * H + 4 * B * C * H
                           + 2 * C * H + 4 * C * H + 2 * H * H * 2
                           + 4 * B * C * H))

    w_spec = pl.BlockSpec((H, H), lambda i: (0, 0), pipeline_mode=_INVARIANT)

    return pl.pallas_call(
        _encoder_kernel,
        out_shape=jax.ShapeDtypeStruct((B, C, H), jnp.float32),
        grid_spec=pltpu.PrefetchScalarGridSpec(
            num_scalar_prefetch=0,
            grid=(B // BB,),
            in_specs=[
                pl.BlockSpec((BB, C, H), lambda i: (i, 0, 0)),
                pl.BlockSpec((BB, C, H), lambda i: (i, 0, 0)),
                pl.BlockSpec((C, H), lambda i: (0, 0),
                             pipeline_mode=_INVARIANT),   # q_beacon (shared)
                pl.BlockSpec((C, H), lambda i: (0, 0),
                             pipeline_mode=_INVARIANT),   # gate (shared)
                w_spec, w_spec,
            ],
            out_specs=pl.BlockSpec((BB, C, H), lambda i: (i, 0, 0)),
        ),
        compiler_params=pltpu.CompilerParams(
            dimension_semantics=("parallel",),
            vmem_limit_bytes=_VMEM_LIMIT),
        cost_estimate=cost,
    )(x_chunk, memory, q_beacon, gate, wk, wv)


# ----------------------------------------------------------------------------
# Parameter construction (deterministic, in-script)
# ----------------------------------------------------------------------------
def _xavier_uniform(key, shape):
    fan_in = shape[1] * shape[2]
    fan_out = shape[0] * shape[2]
    bound = math.sqrt(6.0 / (fan_in + fan_out))
    return jax.random.uniform(key, shape, jnp.float32, -bound, bound)


def make_params(key, hidden, chunk_size, vocab):
    keys = jax.random.split(key, 10)
    scale = 1.0 / math.sqrt(hidden)
    bf = jnp.bfloat16
    return {
        "beacon": _xavier_uniform(keys[0], (1, chunk_size, hidden)).astype(bf),
        "forget": _xavier_uniform(keys[1], (1, chunk_size, hidden)),   # f32
        "w_emb": (jax.random.normal(keys[2], (vocab, hidden), jnp.float32)
                  * 0.02).astype(bf),
        "dec_wq": (jax.random.normal(keys[3], (hidden, hidden)) * scale).astype(bf),
        "dec_wk": (jax.random.normal(keys[4], (hidden, hidden)) * scale).astype(bf),
        "dec_wv": (jax.random.normal(keys[5], (hidden, hidden)) * scale).astype(bf),
        "dec_wo": (jax.random.normal(keys[6], (hidden, hidden)) * scale).astype(bf),
        "enc_wq": (jax.random.normal(keys[7], (hidden, hidden)) * scale).astype(bf),
        "enc_wk": (jax.random.normal(keys[8], (hidden, hidden)) * scale).astype(bf),
        "enc_wv": (jax.random.normal(keys[9], (hidden, hidden)) * scale).astype(bf),
    }


# ----------------------------------------------------------------------------
# Model glue (embedding gather / reshape are wrapper-side XLA ops)
# ----------------------------------------------------------------------------
def model_forward(params, input_ids, memory):
    """Model.forward == decoder forward. Returns logits (B, S, V) f32."""
    B, S = input_ids.shape
    V, H = params["w_emb"].shape
    x = params["w_emb"][input_ids]                           # (B, S, H) bf16
    h = decoder_attention(x, memory,                          # memory stays f32
                          params["dec_wq"], params["dec_wk"],
                          params["dec_wv"], params["dec_wo"])
    logits2d = lm_head(h.reshape(B * S, H), params["w_emb"])  # (B*S, V)
    return logits2d.reshape(B, S, V)


def model_update_memory(params, input_ids, memory, chunk_size):
    """Model.update_memory == encoder forward (only if chunk-sized input)."""
    if input_ids.shape[-1] != chunk_size:
        return None
    x = params["w_emb"][input_ids]                           # (B, C, H) bf16
    H = params["w_emb"].shape[1]
    # grid-invariant precompute, hoisted out of the kernel (computed once):
    gate = jax.nn.sigmoid(params["forget"])[0]               # (C, H) f32
    q_beacon = (jnp.dot(params["beacon"][0].astype(jnp.float32),
                        params["enc_wq"].astype(jnp.float32))
                * (1.0 / math.sqrt(H))).astype(jnp.bfloat16)  # (C, H) bf16
    return update_memory(x, memory, q_beacon, gate,
                         params["enc_wk"], params["enc_wv"])


if __name__ == "__main__":
    # small but lane/sublane-friendly shapes: H, V multiples of 128; S, C
    # multiples of 16 (bf16 sublane packing -> no relayout on reshapes)
    B, S, H, V = 2, 16, 128, 1024
    CHUNK = 16

    key = jax.random.PRNGKey(0)
    pkey, ikey = jax.random.split(key)
    params = make_params(pkey, H, CHUNK, V)

    input_ids = jax.random.randint(ikey, (B, S), 0, V, dtype=jnp.int32)

    # init_memory := zeros (like torch.zeros_like(eos_token) expanded), f32
    init_memory = jnp.zeros((B, CHUNK, H), jnp.float32)

    # encoder path: compress the chunk into updated memory
    memory = model_update_memory(params, input_ids, init_memory, CHUNK)

    # decoder path: Model.forward
    logits = model_forward(params, input_ids, memory)

    jax.block_until_ready((memory, logits))
    assert memory.shape == (B, CHUNK, H)
    assert logits.shape == (B, S, V)
    assert bool(jnp.all(jnp.isfinite(memory)))
    assert bool(jnp.all(jnp.isfinite(logits)))
    print("KERNEL_OK")
</pallas_src>

<mosaic_0001>
module attributes {stable_mosaic.version = 11 : i64} {
  func.func @_encoder_kernel(%arg0: i32, %arg1: memref<1x16x128xbf16, #tpu.memory_space<vmem>>, %arg2: memref<1x16x128xf32, #tpu.memory_space<vmem>>, %arg3: memref<16x128xbf16, #tpu.memory_space<vmem>>, %arg4: memref<16x128xf32, #tpu.memory_space<vmem>>, %arg5: memref<128x128xbf16, #tpu.memory_space<vmem>>, %arg6: memref<128x128xbf16, #tpu.memory_space<vmem>>, %arg7: memref<1x16x128xf32, #tpu.memory_space<vmem>>) attributes {dimension_semantics = [#tpu.dimension_semantics<parallel>], iteration_bounds = array<i64: 2>, scalar_prefetch = 0 : i64, scratch_operands = 0 : i64, tpu.core_type = #tpu.core_type<tc>, window_params = [{transform_indices = @transform_0, window_bounds = array<i64: 1, 16, 128>}, {transform_indices = @transform_1, window_bounds = array<i64: 1, 16, 128>}, {pipeline_mode = #tpu.pipeline_mode<synchronous>, transform_indices = @transform_2, window_bounds = array<i64: 16, 128>}, {pipeline_mode = #tpu.pipeline_mode<synchronous>, transform_indices = @transform_3, window_bounds = array<i64: 16, 128>}, {pipeline_mode = #tpu.pipeline_mode<synchronous>, transform_indices = @transform_4, window_bounds = array<i64: 128, 128>}, {pipeline_mode = #tpu.pipeline_mode<synchronous>, transform_indices = @transform_5, window_bounds = array<i64: 128, 128>}, {transform_indices = @transform_6, window_bounds = array<i64: 1, 16, 128>}]} {
    %c0 = arith.constant 0 : index
    %c0_0 = arith.constant 0 : index
    %c0_1 = arith.constant 0 : index
    %0 = vector.load %arg1[%c0, %c0_0, %c0_1] : memref<1x16x128xbf16, #tpu.memory_space<vmem>>, vector<1x16x128xbf16>
    %c0_2 = arith.constant 0 : index
    %c0_3 = arith.constant 0 : index
    %c0_4 = arith.constant 0 : index
    %1 = vector.load %arg2[%c0_2, %c0_3, %c0_4] : memref<1x16x128xf32, #tpu.memory_space<vmem>>, vector<1x16x128xf32>
    %c0_5 = arith.constant 0 : index
    %c0_6 = arith.constant 0 : index
    %2 = vector.load %arg3[%c0_5, %c0_6] : memref<16x128xbf16, #tpu.memory_space<vmem>>, vector<16x128xbf16>
    %c0_7 = arith.constant 0 : index
    %c0_8 = arith.constant 0 : index
    %3 = vector.load %arg4[%c0_7, %c0_8] : memref<16x128xf32, #tpu.memory_space<vmem>>, vector<16x128xf32>
    %c0_9 = arith.constant 0 : index
    %c0_10 = arith.constant 0 : index
    %4 = vector.load %arg5[%c0_9, %c0_10] : memref<128x128xbf16, #tpu.memory_space<vmem>>, vector<128x128xbf16>
    %c0_11 = arith.constant 0 : index
    %c0_12 = arith.constant 0 : index
    %5 = vector.load %arg6[%c0_11, %c0_12] : memref<128x128xbf16, #tpu.memory_space<vmem>>, vector<128x128xbf16>
    %6 = arith.truncf %1 : vector<1x16x128xf32> to vector<1x16x128xbf16>
    %7 = vector.shape_cast %0 : vector<1x16x128xbf16> to vector<16x128xbf16>
    %8 = vector.shape_cast %6 : vector<1x16x128xbf16> to vector<16x128xbf16>
    %cst = arith.constant dense<0.000000e+00> : vector<16x128xf32>
    %9 = tpu.matmul %8, %4, %cst {dimension_numbers = #tpu.dot_dimension_numbers<[1], [0], [0], [1], [0, 0, 1, 1], [], []>} : vector<16x128xbf16>, vector<128x128xbf16>, vector<16x128xf32> -> vector<16x128xf32>
    %10 = arith.truncf %9 : vector<16x128xf32> to vector<16x128xbf16>
    %11 = vector.shape_cast %10 : vector<16x128xbf16> to vector<1x16x128xbf16>
    %cst_13 = arith.constant dense<0.000000e+00> : vector<16x128xf32>
    %12 = tpu.matmul %8, %5, %cst_13 {dimension_numbers = #tpu.dot_dimension_numbers<[1], [0], [0], [1], [0, 0, 1, 1], [], []>} : vector<16x128xbf16>, vector<128x128xbf16>, vector<16x128xf32> -> vector<16x128xf32>
    %13 = arith.truncf %12 : vector<16x128xf32> to vector<16x128xbf16>
    %14 = vector.shape_cast %13 : vector<16x128xbf16> to vector<1x16x128xbf16>
    %cst_14 = arith.constant dense<0.000000e+00> : vector<16x128xf32>
    %15 = tpu.matmul %7, %4, %cst_14 {dimension_numbers = #tpu.dot_dimension_numbers<[1], [0], [0], [1], [0, 0, 1, 1], [], []>} : vector<16x128xbf16>, vector<128x128xbf16>, vector<16x128xf32> -> vector<16x128xf32>
    %16 = arith.truncf %15 : vector<16x128xf32> to vector<16x128xbf16>
    %17 = vector.shape_cast %16 : vector<16x128xbf16> to vector<1x16x128xbf16>
    %cst_15 = arith.constant dense<0.000000e+00> : vector<16x128xf32>
    %18 = tpu.matmul %7, %5, %cst_15 {dimension_numbers = #tpu.dot_dimension_numbers<[1], [0], [0], [1], [0, 0, 1, 1], [], []>} : vector<16x128xbf16>, vector<128x128xbf16>, vector<16x128xf32> -> vector<16x128xf32>
    %19 = arith.truncf %18 : vector<16x128xf32> to vector<16x128xbf16>
    %20 = vector.shape_cast %19 : vector<16x128xbf16> to vector<1x16x128xbf16>
    %21 = vector.shape_cast %2 : vector<16x128xbf16> to vector<1x16x128xbf16>
    %cst_16 = arith.constant dense<0.000000e+00> : vector<1x16x16xf32>
    %22 = tpu.matmul %21, %11, %cst_16 {dimension_numbers = #tpu.dot_dimension_numbers<[2], [2], [1], [1], [0, 0, 0, 1, 1, 1], [0], [0]>} : vector<1x16x128xbf16>, vector<1x16x128xbf16>, vector<1x16x16xf32> -> vector<1x16x16xf32>
    %cst_17 = arith.constant dense<0.000000e+00> : vector<1x16x16xf32>
    %23 = tpu.matmul %21, %17, %cst_17 {dimension_numbers = #tpu.dot_dimension_numbers<[2], [2], [1], [1], [0, 0, 0, 1, 1, 1], [0], [0]>} : vector<1x16x128xbf16>, vector<1x16x128xbf16>, vector<1x16x16xf32> -> vector<1x16x16xf32>
    %cst_18 = arith.constant dense<0xFF800000> : vector<1x16xf32>
    %24 = vector.multi_reduction <maximumf>, %22, %cst_18 [2] : vector<1x16x16xf32> to vector<1x16xf32>
    %25 = vector.shape_cast %24 : vector<1x16xf32> to vector<1x16x1xf32>
    %cst_19 = arith.constant dense<0xFF800000> : vector<1x16xf32>
    %26 = vector.multi_reduction <maximumf>, %23, %cst_19 [2] : vector<1x16x16xf32> to vector<1x16xf32>
    %27 = vector.shape_cast %26 : vector<1x16xf32> to vector<1x16x1xf32>
    %28 = arith.maximumf %25, %27 : vector<1x16x1xf32>
    %29 = vector.broadcast %28 : vector<1x16x1xf32> to vector<1x16x16xf32>
    %30 = arith.subf %22, %29 : vector<1x16x16xf32>
    %31 = math.exp %30 : vector<1x16x16xf32>
    %32 = vector.broadcast %28 : vector<1x16x1xf32> to vector<1x16x16xf32>
    %33 = arith.subf %23, %32 : vector<1x16x16xf32>
    %34 = math.exp %33 : vector<1x16x16xf32>
    %cst_20 = arith.constant dense<0.000000e+00> : vector<1x16xf32>
    %35 = vector.multi_reduction <add>, %31, %cst_20 [2] : vector<1x16x16xf32> to vector<1x16xf32>
    %36 = vector.shape_cast %35 : vector<1x16xf32> to vector<1x16x1xf32>
    %cst_21 = arith.constant dense<0.000000e+00> : vector<1x16xf32>
    %37 = vector.multi_reduction <add>, %34, %cst_21 [2] : vector<1x16x16xf32> to vector<1x16xf32>
    %38 = vector.shape_cast %37 : vector<1x16xf32> to vector<1x16x1xf32>
    %39 = arith.addf %36, %38 : vector<1x16x1xf32>
    %40 = tpu.reciprocal %39 {approx = true} : vector<1x16x1xf32> -> vector<1x16x1xf32>
    %41 = arith.truncf %31 : vector<1x16x16xf32> to vector<1x16x16xbf16>
    %cst_22 = arith.constant dense<0.000000e+00> : vector<1x16x128xf32>
    %42 = tpu.matmul %41, %14, %cst_22 {dimension_numbers = #tpu.dot_dimension_numbers<[2], [1], [1], [2], [0, 0, 0, 1, 1, 2], [0], [0]>} : vector<1x16x16xbf16>, vector<1x16x128xbf16>, vector<1x16x128xf32> -> vector<1x16x128xf32>
    %43 = arith.truncf %34 : vector<1x16x16xf32> to vector<1x16x16xbf16>
    %cst_23 = arith.constant dense<0.000000e+00> : vector<1x16x128xf32>
    %44 = tpu.matmul %43, %20, %cst_23 {dimension_numbers = #tpu.dot_dimension_numbers<[2], [1], [1], [2], [0, 0, 0, 1, 1, 2], [0], [0]>} : vector<1x16x16xbf16>, vector<1x16x128xbf16>, vector<1x16x128xf32> -> vector<1x16x128xf32>
    %45 = arith.addf %42, %44 : vector<1x16x128xf32>
    %46 = vector.broadcast %40 : vector<1x16x1xf32> to vector<1x16x128xf32>
    %47 = arith.mulf %45, %46 : vector<1x16x128xf32>
    %48 = vector.shape_cast %3 : vector<16x128xf32> to vector<1x16x128xf32>
    %49 = arith.mulf %48, %1 : vector<1x16x128xf32>
    %cst_24 = arith.constant 1.000000e+00 : f32
    %50 = vector.broadcast %cst_24 : f32 to vector<1x16x128xf32>
    %51 = arith.subf %50, %48 : vector<1x16x128xf32>
    %52 = arith.mulf %51, %47 : vector<1x16x128xf32>
    %53 = arith.addf %49, %52 : vector<1x16x128xf32>
    %c0_25 = arith.constant 0 : index
    %c0_26 = arith.constant 0 : index
    %c0_27 = arith.constant 0 : index
    %54 = vector.load %arg7[%c0_25, %c0_26, %c0_27] : memref<1x16x128xf32, #tpu.memory_space<vmem>>, vector<1x16x128xf32>
    tpu.vector_store %arg7[%c0_25, %c0_26, %c0_27], %53 {strides = array<i32>} : memref<1x16x128xf32, #tpu.memory_space<vmem>>, vector<1x16x128xf32>,
    return
  }
  func.func @transform_0(%arg0: i32) -> (i32, i32, i32) {
    %c0_i32 = arith.constant 0 : i32
    %c0_i32_0 = arith.constant 0 : i32
    %c0_i32_1 = arith.constant 0 : i32
    return %arg0, %c0_i32, %c0_i32_0 : i32, i32, i32
  }
  func.func @transform_1(%arg0: i32) -> (i32, i32, i32) {
    %c0_i32 = arith.constant 0 : i32
    %c0_i32_0 = arith.constant 0 : i32
    %c0_i32_1 = arith.constant 0 : i32
    return %arg0, %c0_i32, %c0_i32_0 : i32, i32, i32
  }
  func.func @transform_2(%arg0: i32) -> (i32, i32) {
    %c0_i32 = arith.constant 0 : i32
    %c0_i32_0 = arith.constant 0 : i32
    %c0_i32_1 = arith.constant 0 : i32
    return %c0_i32, %c0_i32_0 : i32, i32
  }
  func.func @transform_3(%arg0: i32) -> (i32, i32) {
    %c0_i32 = arith.constant 0 : i32
    %c0_i32_0 = arith.constant 0 : i32
    %c0_i32_1 = arith.constant 0 : i32
    return %c0_i32, %c0_i32_0 : i32, i32
  }
  func.func @transform_4(%arg0: i32) -> (i32, i32) {
    %c0_i32 = arith.constant 0 : i32
    %c0_i32_0 = arith.constant 0 : i32
    %c0_i32_1 = arith.constant 0 : i32
    return %c0_i32, %c0_i32_0 : i32, i32
  }
  func.func @transform_5(%arg0: i32) -> (i32, i32) {
    %c0_i32 = arith.constant 0 : i32
    %c0_i32_0 = arith.constant 0 : i32
    %c0_i32_1 = arith.constant 0 : i32
    return %c0_i32, %c0_i32_0 : i32, i32
  }
  func.func @transform_6(%arg0: i32) -> (i32, i32, i32) {
    %c0_i32 = arith.constant 0 : i32
    %c0_i32_0 = arith.constant 0 : i32
    %c0_i32_1 = arith.constant 0 : i32
    return %arg0, %c0_i32, %c0_i32_0 : i32, i32, i32
  }
}

</mosaic_0001>

<llo_original>
// kernel: tpu_custom_call.1
$region0: #{tpu_custom_call.1}
  #allocation0 [shape = 'u32[]', space=smem, size = 0x4, offset = 0x4, fixed_abs, tag = 'smem constant byte address 0x4 - core index']
  #allocation1 [shape = 'u32[144,128]{1,0:T(1,128)}', space=vmem, size = 0x12000, scoped, tag = 'internal scratch']
  %s0 = inlined_call_operand.hbm [shape: bf16[2,16,128], index: 0, kind: input, shape index: {}]
  %s1 = inlined_call_operand.hbm [shape: f32[2,16,128], index: 1, kind: input, shape index: {}]
  %s2 = inlined_call_operand.hbm [shape: bf16[16,128], index: 2, kind: input, shape index: {}]
  %s3 = inlined_call_operand.hbm [shape: f32[16,128], index: 3, kind: input, shape index: {}]
  %s4 = inlined_call_operand.hbm [shape: bf16[128,128], index: 4, kind: input, shape index: {}]
  %s5 = inlined_call_operand.hbm [shape: bf16[128,128], index: 5, kind: input, shape index: {}]
  %s6 = inlined_call_operand.hbm [shape: f32[2,16,128], index: 6, kind: output, shape index: {}]
  %s7 = sld [smem:[#allocation0]]
  $region81: #{tpu_custom_call.1} parent=0
    _
  %s9 = ssub.s32 1, %s7
  %s10 = scalar_select 0, %s9, %s7
  $region1: #{tpu_custom_call.1} parent=0
    #allocation2 [shape = 'u8[8192]{0}', space=vmem, size = 0x2000, scoped, tag = 'input window, operand 0']
    #allocation3 [shape = 's32[2]{0}', space=sflag, size = 0x8, scoped, tag = 'scoped memory for tpu_custom_call.1']
    #allocation4 [shape = 's32[2]{0}', space=sflag, size = 0x8, scoped, tag = 'scoped memory for tpu_custom_call.1']
    #allocation5 [shape = 'u8[16384]{0}', space=vmem, size = 0x4000, scoped, tag = 'input window, operand 1']
    #allocation6 [shape = 's32[2]{0}', space=sflag, size = 0x8, scoped, tag = 'scoped memory for tpu_custom_call.1']
    #allocation7 [shape = 'u8[4096]{0}', space=vmem, size = 0x1000, scoped, tag = 'input window, operand 2, single buffered']
    #allocation8 [shape = 'u8[8192]{0}', space=vmem, size = 0x2000, scoped, tag = 'input window, operand 3, single buffered']
    #allocation9 [shape = 's32[1]{0}', space=sflag, size = 0x4, scoped, tag = 'scoped memory for tpu_custom_call.1']
    #allocation10 [shape = 'u8[32768]{0}', space=vmem, size = 0x8000, scoped, tag = 'input window, operand 4, single buffered']
    #allocation11 [shape = 'u8[32768]{0}', space=vmem, size = 0x8000, scoped, tag = 'input window, operand 5, single buffered']
    #allocation12 [shape = 's32[1]{0}', space=sflag, size = 0x4, scoped, tag = 'scoped memory for tpu_custom_call.1']
    #allocation13 [shape = 'u8[16384]{0}', space=vmem, size = 0x4000, scoped, tag = 'output window, operand 0']
    %11 = vsyncpa [#allocation3], 0
    %s12 = scalar_lea.sflag [#allocation3], 1
    %13 = vsyncpa %s12, 0
    %14 = vsyncpa [#allocation6], 0
    %s15 = scalar_lea.sflag [#allocation6], 1
    %16 = vsyncpa %s15, 0
    %17 = vsyncpa [#allocation9], 0
    %18 = vsyncpa [#allocation12], 0
    %19 = vsyncpa [#allocation4], 0
    %s20 = scalar_lea.sflag [#allocation4], 1
    %21 = vsyncpa %s20, 0
    loop: start=0, step=1, limit=4
    $region2: #{tpu_custom_call.1} parent=1 // loop_pre_header
      _
    $region3: #{tpu_custom_call.1} parent=1 // loop_header
      %s23 = sphi 0, %s27
      %p24 = scmp.ge.s32.totalorder %s23, 4
      %s33 = sphi 0, %s35
      %s36 = sphi 0, %s33
      %s37 = sphi 0, %s36
      %s53 = sphi 0, %s37
      %s59 = sphi 0, %s61
      %s62 = sphi 0, %s59
      %s63 = sphi 0, %s62
      %s79 = sphi 0, %s63
      %s83 = sphi 0, %s83
      %s85 = sphi 0, %s83
      %s86 = sphi 0, %s85
      %s100 = sphi 0, %s86
      %s104 = sphi 0, %s104
      %s106 = sphi 0, %s104
      %s107 = sphi 0, %s106
      %s121 = sphi 0, %s107
      %s125 = sphi 0, %s125
      %s127 = sphi 0, %s125
      %s128 = sphi 0, %s127
      %s142 = sphi 0, %s128
      %s146 = sphi 0, %s146
      %s148 = sphi 0, %s146
      %s149 = sphi 0, %s148
      %s163 = sphi 0, %s149
      %s169 = sphi 0, %s171
      %s172 = sphi 0, %s169
      %s173 = sphi 0, %s172
      %s189 = sphi 0, %s173
    $region4: #{tpu_custom_call.1} parent=1 // loop_header_branch
      %26 = sbr.rel (%p24) target = $region8
    $region5: #{tpu_custom_call.1} parent=1 // loop_body
      %s28 = ssub.s32 %s23, 1
      %s29 = ssub.s32 %s23, 2
      %s30 = sadd.s32 %s23, 1
      %s31 = ssub.s32 %s23, %s30
      %p32 = scmp.eq.s32.totalorder %s31, 0
      %s34 = sadd.s32 %s33, 1
      %s35 = scalar_select %p32, %s33, %s34
      %p38 = pneg %p32
      %p39 = scmp.eq.s32.totalorder %s23, 1
      %p40 = por %p38, %p39
      %p41 = scmp.ne.s32.totalorder %s33, %s36
      %p42 = scmp.eq.s32.totalorder %s23, 0
      %p43 = por %p41, %p42
      %p44 = scmp.ne.s32.totalorder %s33, %s36
      %p45 = scmp.eq.s32.totalorder %s28, 1
      %p46 = por %p44, %p45
      %p47 = scmp.ne.s32.totalorder %s36, %s37
      %p48 = scmp.eq.s32.totalorder %s28, 0
      %p49 = por %p47, %p48
      %p50 = scmp.ne.s32.totalorder %s36, %s37
      %p51 = scmp.eq.s32.totalorder %s29, 1
      %p52 = por %p50, %p51
      %p54 = scmp.ne.s32.totalorder %s37, %s53
      %p55 = scmp.eq.s32.totalorder %s29, 0
      %p56 = por %p54, %p55
      %s57 = ssub.s32 %s23, %s30
      %p58 = scmp.eq.s32.totalorder %s57, 0
      %s60 = sadd.s32 %s59, 1
      %s61 = scalar_select %p58, %s59, %s60
      %p64 = pneg %p58
      %p65 = scmp.eq.s32.totalorder %s23, 1
      %p66 = por %p64, %p65
      %p67 = scmp.ne.s32.totalorder %s59, %s62
      %p68 = scmp.eq.s32.totalorder %s23, 0
      %p69 = por %p67, %p68
      %p70 = scmp.ne.s32.totalorder %s59, %s62
      %p71 = scmp.eq.s32.totalorder %s28, 1
      %p72 = por %p70, %p71
      %p73 = scmp.ne.s32.totalorder %s62, %s63
      %p74 = scmp.eq.s32.totalorder %s28, 0
      %p75 = por %p73, %p74
      %p76 = scmp.ne.s32.totalorder %s62, %s63
      %p77 = scmp.eq.s32.totalorder %s29, 1
      %p78 = por %p76, %p77
      %p80 = scmp.ne.s32.totalorder %s63, %s79
      %p81 = scmp.eq.s32.totalorder %s29, 0
      %p82 = por %p80, %p81
      %s84 = sadd.s32 %s83, 1
      %p87 = scmp.eq.s32.totalorder %s23, 1
      %p88 = scmp.ne.s32.totalorder %s83, %s85
      %p89 = scmp.eq.s32.totalorder %s23, 0
      %p90 = por %p88, %p89
      %p91 = scmp.ne.s32.totalorder %s83, %s85
      %p92 = scmp.eq.s32.totalorder %s28, 1
      %p93 = por %p91, %p92
      %p94 = scmp.ne.s32.totalorder %s85, %s86
      %p95 = scmp.eq.s32.totalorder %s28, 0
      %p96 = por %p94, %p95
      %p97 = scmp.ne.s32.totalorder %s85, %s86
      %p98 = scmp.eq.s32.totalorder %s29, 1
      %p99 = por %p97, %p98
      %p101 = scmp.ne.s32.totalorder %s86, %s100
      %p102 = scmp.eq.s32.totalorder %s29, 0
      %p103 = por %p101, %p102
      %s105 = sadd.s32 %s104, 1
      %p108 = scmp.eq.s32.totalorder %s23, 1
      %p109 = scmp.ne.s32.totalorder %s104, %s106
      %p110 = scmp.eq.s32.totalorder %s23, 0
      %p111 = por %p109, %p110
      %p112 = scmp.ne.s32.totalorder %s104, %s106
      %p113 = scmp.eq.s32.totalorder %s28, 1
      %p114 = por %p112, %p113
      %p115 = scmp.ne.s32.totalorder %s106, %s107
      %p116 = scmp.eq.s32.totalorder %s28, 0
      %p117 = por %p115, %p116
      %p118 = scmp.ne.s32.totalorder %s106, %s107
      %p119 = scmp.eq.s32.totalorder %s29, 1
      %p120 = por %p118, %p119
      %p122 = scmp.ne.s32.totalorder %s107, %s121
      %p123 = scmp.eq.s32.totalorder %s29, 0
      %p124 = por %p122, %p123
      %s126 = sadd.s32 %s125, 1
      %p129 = scmp.eq.s32.totalorder %s23, 1
      %p130 = scmp.ne.s32.totalorder %s125, %s127
      %p131 = scmp.eq.s32.totalorder %s23, 0
      %p132 = por %p130, %p131
      %p133 = scmp.ne.s32.totalorder %s125, %s127
      %p134 = scmp.eq.s32.totalorder %s28, 1
      %p135 = por %p133, %p134
      %p136 = scmp.ne.s32.totalorder %s127, %s128
      %p137 = scmp.eq.s32.totalorder %s28, 0
      %p138 = por %p136, %p137
      %p139 = scmp.ne.s32.totalorder %s127, %s128
      %p140 = scmp.eq.s32.totalorder %s29, 1
      %p141 = por %p139, %p140
      %p143 = scmp.ne.s32.totalorder %s128, %s142
      %p144 = scmp.eq.s32.totalorder %s29, 0
      %p145 = por %p143, %p144
      %s147 = sadd.s32 %s146, 1
      %p150 = scmp.eq.s32.totalorder %s23, 1
      %p151 = scmp.ne.s32.totalorder %s146, %s148
      %p152 = scmp.eq.s32.totalorder %s23, 0
      %p153 = por %p151, %p152
      %p154 = scmp.ne.s32.totalorder %s146, %s148
      %p155 = scmp.eq.s32.totalorder %s28, 1
      %p156 = por %p154, %p155
      %p157 = scmp.ne.s32.totalorder %s148, %s149
      %p158 = scmp.eq.s32.totalorder %s28, 0
      %p159 = por %p157, %p158
      %p160 = scmp.ne.s32.totalorder %s148, %s149
      %p161 = scmp.eq.s32.totalorder %s29, 1
      %p162 = por %p160, %p161
      %p164 = scmp.ne.s32.totalorder %s149, %s163
      %p165 = scmp.eq.s32.totalorder %s29, 0
      %p166 = por %p164, %p165
      %s167 = ssub.s32 %s23, %s30
      %p168 = scmp.eq.s32.totalorder %s167, 0
      %s170 = sadd.s32 %s169, 1
      %s171 = scalar_select %p168, %s169, %s170
      %p174 = pneg %p168
      %p175 = scmp.eq.s32.totalorder %s23, 1
      %p176 = por %p174, %p175
      %p177 = scmp.ne.s32.totalorder %s169, %s172
      %p178 = scmp.eq.s32.totalorder %s23, 0
      %p179 = por %p177, %p178
      %p180 = scmp.ne.s32.totalorder %s169, %s172
      %p181 = scmp.eq.s32.totalorder %s28, 1
      %p182 = por %p180, %p181
      %p183 = scmp.ne.s32.totalorder %s172, %s173
      %p184 = scmp.eq.s32.totalorder %s28, 0
      %p185 = por %p183, %p184
      %p186 = scmp.ne.s32.totalorder %s172, %s173
      %p187 = scmp.eq.s32.totalorder %s29, 1
      %p188 = por %p186, %p187
      %p190 = scmp.ne.s32.totalorder %s173, %s189
      %p191 = scmp.eq.s32.totalorder %s29, 0
      %p192 = por %p190, %p191
      %p193 = scmp.le.s32.totalorder 1, %s23
      %p194 = scmp.lt.s32.totalorder %s23, 3
      %p195 = pnand %p193, %p194
      %p196 = pneg %p195
      // Predicated region
      $region9: #{tpu_custom_call.1} parent=5 // pred_check
        _
      $region10: #{tpu_custom_call.1} parent=5 // pred_check_branch
        %198 = sbr.rel (%p195) target = $region12
      $region11: #{tpu_custom_call.1} parent=5 // pred_region
        %s199 = ssub.s32 %s23, 1
        // Predicated region
        $region13: #{tpu_custom_call.1} parent=11 // pred_check
          %p200 = pneg %p96
        $region14: #{tpu_custom_call.1} parent=11 // pred_check_branch
          %202 = sbr.rel (%p200) target = $region16
        $region15: #{tpu_custom_call.1} parent=11 // pred_region
          %s204 = ssub.s32 128, 128
          %205 = vsyncadd [#allocation6], %s204
          %s206 = sshll.u32 [#allocation7], 4
          %s207 = int_to_ptr.vmem [resolvable:$true] %s206
          %212 = dma.hbm_to_vmem [thread:$0]  %s2, 128, %s207, [#allocation6], 64, 64, 4
        $region16: #{tpu_custom_call.1} parent=11 // pred_fallthru
          _
        // Predicated region
        $region17: #{tpu_custom_call.1} parent=11 // pred_check
          %p213 = pneg %p117
        $region18: #{tpu_custom_call.1} parent=11 // pred_check_branch
          %215 = sbr.rel (%p213) target = $region20
        $region19: #{tpu_custom_call.1} parent=11 // pred_region
          %s217 = ssub.s32 256, 256
          %218 = vsyncadd [#allocation9], %s217
          %s219 = sshll.u32 [#allocation8], 4
          %s220 = int_to_ptr.vmem [resolvable:$true] %s219
          %225 = dma.hbm_to_vmem [thread:$0]  %s3, 256, %s220, [#allocation9], 128, 128, 8
        $region20: #{tpu_custom_call.1} parent=11 // pred_fallthru
          _
        // Predicated region
        $region21: #{tpu_custom_call.1} parent=11 // pred_check
          %p226 = pneg %p138
        $region22: #{tpu_custom_call.1} parent=11 // pred_check_branch
          %228 = sbr.rel (%p226) target = $region24
        $region23: #{tpu_custom_call.1} parent=11 // pred_region
          %s230 = ssub.s32 1024, 1024
          %231 = vsyncadd [#allocation9], %s230
          %s232 = sshll.u32 [#allocation10], 4
          %s233 = int_to_ptr.vmem [resolvable:$true] %s232
          %238 = dma.hbm_to_vmem [thread:$0]  %s4, 1024, %s233, [#allocation9], 64, 64, 4
        $region24: #{tpu_custom_call.1} parent=11 // pred_fallthru
          _
        // Predicated region
        $region25: #{tpu_custom_call.1} parent=11 // pred_check
          %p239 = pneg %p159
        $region26: #{tpu_custom_call.1} parent=11 // pred_check_branch
          %241 = sbr.rel (%p239) target = $region28
        $region27: #{tpu_custom_call.1} parent=11 // pred_region
          %s243 = ssub.s32 1024, 1024
          %244 = vsyncadd [#allocation12], %s243
          %s245 = sshll.u32 [#allocation11], 4
          %s246 = int_to_ptr.vmem [resolvable:$true] %s245
          %251 = dma.hbm_to_vmem [thread:$0]  %s5, 1024, %s246, [#allocation12], 64, 64, 4
        $region28: #{tpu_custom_call.1} parent=11 // pred_fallthru
          _
      $region12: #{tpu_custom_call.1} parent=5 // pred_fallthru
        _
      %p252 = scmp.lt.s32.totalorder %s23, 2
      // Predicated region
      $region29: #{tpu_custom_call.1} parent=5 // pred_check
        %p253 = pneg %p252
      $region30: #{tpu_custom_call.1} parent=5 // pred_check_branch
        %255 = sbr.rel (%p253) target = $region32
      $region31: #{tpu_custom_call.1} parent=5 // pred_region
        // Predicated region
        $region33: #{tpu_custom_call.1} parent=31 // pred_check
          %p256 = pneg %p43
        $region34: #{tpu_custom_call.1} parent=31 // pred_check_branch
          %258 = sbr.rel (%p256) target = $region36
        $region35: #{tpu_custom_call.1} parent=31 // pred_region
          %s259 = sand.u32 %s33, 1
          %s260 = scalar_lea.sflag [#allocation3], %s259
          %s261 = sand.u32 %s33, 1
          %s262 = smul.addr %s261, 8
          %s263 = scalar_lea.vmem [#allocation2], %s262
          %s265 = ssub.s32 128, 128
          %266 = vsyncadd %s260, %s265
          %s267 = smul.addr %s23, 2
          %s268 = smul.addr %s267, 64
          %s269 = scalar_lea.hbm %s0, %s268
          %s270 = sshll.u32 %s263, 4
          %s271 = int_to_ptr.vmem [resolvable:$true] %s270
          %276 = dma.hbm_to_vmem [thread:$0]  %s269, 128, %s271, %s260, 64, 64, 4
        $region36: #{tpu_custom_call.1} parent=31 // pred_fallthru
          _
        // Predicated region
        $region37: #{tpu_custom_call.1} parent=31 // pred_check
          %p277 = pneg %p69
        $region38: #{tpu_custom_call.1} parent=31 // pred_check_branch
          %279 = sbr.rel (%p277) target = $region40
        $region39: #{tpu_custom_call.1} parent=31 // pred_region
          %s280 = sand.u32 %s23, 1
          %s281 = scalar_lea.sflag [#allocation6], %s280
          %s282 = sand.u32 %s59, 1
          %s283 = smul.addr %s282, 16
          %s284 = scalar_lea.vmem [#allocation5], %s283
          %s286 = ssub.s32 256, 256
          %287 = vsyncadd %s281, %s286
          %s288 = smul.addr %s23, 2
          %s289 = smul.addr %s288, 128
          %s290 = scalar_lea.hbm %s1, %s289
          %s291 = sshll.u32 %s284, 4
          %s292 = int_to_ptr.vmem [resolvable:$true] %s291
          %297 = dma.hbm_to_vmem [thread:$0]  %s290, 256, %s292, %s281, 128, 128, 8
        $region40: #{tpu_custom_call.1} parent=31 // pred_fallthru
          _
      $region32: #{tpu_custom_call.1} parent=5 // pred_fallthru
        _
      %p298 = scmp.le.s32.totalorder 1, %s23
      %p299 = scmp.lt.s32.totalorder %s23, 3
      %p300 = pnand %p298, %p299
      %p301 = pneg %p300
      // Predicated region
      $region41: #{tpu_custom_call.1} parent=5 // pred_check
        _
      $region42: #{tpu_custom_call.1} parent=5 // pred_check_branch
        %303 = sbr.rel (%p300) target = $region44
      $region43: #{tpu_custom_call.1} parent=5 // pred_region
        %s304 = ssub.s32 %s23, 1
        %s305 = sand.u32 %s36, 1
        %s306 = scalar_lea.sflag [#allocation3], %s305
        %s307 = sand.u32 %s36, 1
        %s308 = smul.addr %s307, 8
        %s309 = scalar_lea.vmem [#allocation2], %s308
        // Predicated region
        $region45: #{tpu_custom_call.1} parent=43 // pred_check
          %p310 = pneg %p49
        $region46: #{tpu_custom_call.1} parent=43 // pred_check_branch
          %312 = sbr.rel (%p310) target = $region48
        $region47: #{tpu_custom_call.1} parent=43 // pred_region
          %313 = dma.done %s306, 128
        $region48: #{tpu_custom_call.1} parent=43 // pred_fallthru
          _
        %s314 = sand.u32 %s28, 1
        %s315 = scalar_lea.sflag [#allocation6], %s314
        %s316 = sand.u32 %s62, 1
        %s317 = smul.addr %s316, 16
        %s318 = scalar_lea.vmem [#allocation5], %s317
        // Predicated region
        $region49: #{tpu_custom_call.1} parent=43 // pred_check
          %p319 = pneg %p75
        $region50: #{tpu_custom_call.1} parent=43 // pred_check_branch
          %321 = sbr.rel (%p319) target = $region52
        $region51: #{tpu_custom_call.1} parent=43 // pred_region
          %322 = dma.done %s315, 256
        $region52: #{tpu_custom_call.1} parent=43 // pred_fallthru
          _
        // Predicated region
        $region53: #{tpu_custom_call.1} parent=43 // pred_check
          %p323 = pneg %p96
        $region54: #{tpu_custom_call.1} parent=43 // pred_check_branch
          %325 = sbr.rel (%p323) target = $region56
        $region55: #{tpu_custom_call.1} parent=43 // pred_region
          %326 = dma.done [#allocation6], 128
        $region56: #{tpu_custom_call.1} parent=43 // pred_fallthru
          _
        // Predicated region
        $region57: #{tpu_custom_call.1} parent=43 // pred_check
          %p327 = pneg %p117
        $region58: #{tpu_custom_call.1} parent=43 // pred_check_branch
          %329 = sbr.rel (%p327) target = $region60
        $region59: #{tpu_custom_call.1} parent=43 // pred_region
          %330 = dma.done [#allocation9], 256
        $region60: #{tpu_custom_call.1} parent=43 // pred_fallthru
          _
        // Predicated region
        $region61: #{tpu_custom_call.1} parent=43 // pred_check
          %p331 = pneg %p138
        $region62: #{tpu_custom_call.1} parent=43 // pred_check_branch
          %333 = sbr.rel (%p331) target = $region64
        $region63: #{tpu_custom_call.1} parent=43 // pred_region
          %334 = dma.done [#allocation9], 1024
        $region64: #{tpu_custom_call.1} parent=43 // pred_fallthru
          _
        // Predicated region
        $region65: #{tpu_custom_call.1} parent=43 // pred_check
          %p335 = pneg %p159
        $region66: #{tpu_custom_call.1} parent=43 // pred_check_branch
          %337 = sbr.rel (%p335) target = $region68
        $region67: #{tpu_custom_call.1} parent=43 // pred_region
          %338 = dma.done [#allocation12], 1024
        $region68: #{tpu_custom_call.1} parent=43 // pred_fallthru
          _
        %s339 = sand.u32 %s36, 1
        %s340 = scalar_lea.sflag [#allocation3], %s339
        %s341 = sand.u32 %s36, 1
        %s342 = smul.addr %s341, 8
        %s343 = scalar_lea.vmem [#allocation2], %s342
        %p344 = pneg %p49
        %p345 = pneg %p46
        %s346 = sand.u32 %s28, 1
        %s347 = scalar_lea.sflag [#allocation6], %s346
        %s348 = sand.u32 %s62, 1
        %s349 = smul.addr %s348, 16
        %s350 = scalar_lea.vmem [#allocation5], %s349
        %p351 = pneg %p75
        %p352 = pneg %p72
        %p353 = pneg %p96
        %p354 = pneg %p93
        %p355 = pneg %p117
        %p356 = pneg %p114
        %p357 = pneg %p138
        %p358 = pneg %p135
        %p359 = pneg %p159
        %p360 = pneg %p156
        %p361 = pneg %p185
        %p362 = pneg %p182
        %s363 = sand.u32 %s172, 1
        %s364 = scalar_lea.sflag [#allocation4], %s363
        %s365 = sand.u32 %s172, 1
        %s366 = smul.addr %s365, 16
        %s367 = scalar_lea.vmem [#allocation13], %s366
        %v369 = vld [vmem:[%s309] sm:$0xf]
        %v370 = vld [vmem:[%s309 + $0x4] sm:$0xf]
        %v371 = vld [vmem:[%s318] sm:$0xff]
        %v372 = vld [vmem:[%s318 + $0x8] sm:$0xff]
        %v373 = vld [vmem:[#allocation7] sm:$0xf]
        %v374 = vld [vmem:[#allocation7 + $0x4] sm:$0xf]
        %v375 = vld [vmem:[#allocation8] sm:$0xff]
        %v376 = vld [vmem:[#allocation8 + $0x8] sm:$0xff]
        %v377 = vld [vmem:[#allocation10] sm:$0xf]
        %v378 = vld [vmem:[#allocation10 + $0x4] sm:$0xf]
        %v379 = vld [vmem:[#allocation10 + $0x8] sm:$0xf]
        %v380 = vld [vmem:[#allocation10 + $0xc] sm:$0xf]
        %v381 = vld [vmem:[#allocation10 + $0x10] sm:$0xf]
        %v382 = vld [vmem:[#allocation10 + $0x14] sm:$0xf]
        %v383 = vld [vmem:[#allocation10 + $0x18] sm:$0xf]
        %v384 = vld [vmem:[#allocation10 + $0x1c] sm:$0xf]
        %v385 = vld [vmem:[#allocation10 + $0x20] sm:$0xf]
        %v386 = vld [vmem:[#allocation10 + $0x24] sm:$0xf]
        %v387 = vld [vmem:[#allocation10 + $0x28] sm:$0xf]
        %v388 = vld [vmem:[#allocation10 + $0x2c] sm:$0xf]
        %v389 = vld [vmem:[#allocation10 + $0x30] sm:$0xf]
        %v390 = vld [vmem:[#allocation10 + $0x34] sm:$0xf]
        %v391 = vld [vmem:[#allocation10 + $0x38] sm:$0xf]
        %v392 = vld [vmem:[#allocation10 + $0x3c] sm:$0xf]
        %v393 = vld [vmem:[#allocation11] sm:$0xf]
        %v394 = vld [vmem:[#allocation11 + $0x4] sm:$0xf]
        %v395 = vld [vmem:[#allocation11 + $0x8] sm:$0xf]
        %v396 = vld [vmem:[#allocation11 + $0xc] sm:$0xf]
        %v397 = vld [vmem:[#allocation11 + $0x10] sm:$0xf]
        %v398 = vld [vmem:[#allocation11 + $0x14] sm:$0xf]
        %v399 = vld [vmem:[#allocation11 + $0x18] sm:$0xf]
        %v400 = vld [vmem:[#allocation11 + $0x1c] sm:$0xf]
        %v401 = vld [vmem:[#allocation11 + $0x20] sm:$0xf]
        %v402 = vld [vmem:[#allocation11 + $0x24] sm:$0xf]
        %v403 = vld [vmem:[#allocation11 + $0x28] sm:$0xf]
        %v404 = vld [vmem:[#allocation11 + $0x2c] sm:$0xf]
        %v405 = vld [vmem:[#allocation11 + $0x30] sm:$0xf]
        %v406 = vld [vmem:[#allocation11 + $0x34] sm:$0xf]
        %v407 = vld [vmem:[#allocation11 + $0x38] sm:$0xf]
        %v408 = vld [vmem:[#allocation11 + $0x3c] sm:$0xf]
        %v409 = vpack.c.bf16 %v372, %v371
        %v426 = vunpack.c.l.b16 %v377
        %v427 = vunpack.c.l.b16 %v378
        %v428 = vunpack.c.l.b16 %v379
        %v429 = vunpack.c.l.b16 %v380
        %v430 = vunpack.c.l.b16 %v381
        %v431 = vunpack.c.l.b16 %v382
        %v432 = vunpack.c.l.b16 %v383
        %v433 = vunpack.c.l.b16 %v384
        %v434 = vunpack.c.l.b16 %v385
        %v435 = vunpack.c.l.b16 %v386
        %v436 = vunpack.c.l.b16 %v387
        %v437 = vunpack.c.l.b16 %v388
        %v438 = vunpack.c.l.b16 %v389
        %v439 = vunpack.c.l.b16 %v390
        %v440 = vunpack.c.l.b16 %v391
        %v441 = vunpack.c.l.b16 %v392
        %v442 = vpack.c.b16 %v427, %v426
        %v443 = vpack.c.b16 %v429, %v428
        %v444 = vpack.c.b16 %v431, %v430
        %v445 = vpack.c.b16 %v433, %v432
        %v446 = vpack.c.b16 %v435, %v434
        %v447 = vpack.c.b16 %v437, %v436
        %v448 = vpack.c.b16 %v439, %v438
        %v449 = vpack.c.b16 %v441, %v440
        %458 = vmatprep.subr.bf16.mxu0 0
        %459 = vmatpush1.bf16.msra.mxu0 %v442
        %460 = vmatprep.subr.bf16.mxu0 0
        %461 = vmatpush1.bf16.msra.mxu0 %v443
        %462 = vmatprep.subr.bf16.mxu0 0
        %463 = vmatpush1.bf16.msra.mxu0 %v444
        %464 = vmatprep.subr.bf16.mxu0 0
        %465 = vmatpush1.bf16.msra.mxu0 %v445
        %466 = vmatprep.subr.bf16.mxu0 0
        %467 = vmatpush1.bf16.msra.mxu0 %v446
        %468 = vmatprep.subr.bf16.mxu0 0
        %469 = vmatpush1.bf16.msra.mxu0 %v447
        %470 = vmatprep.subr.bf16.mxu0 0
        %471 = vmatpush1.bf16.msra.mxu0 %v448
        %472 = vmatprep.subr.bf16.mxu0 0
        %473 = vmatpush1.bf16.msra.mxu0 %v449
        %474 = vmatprep.subr.bf16.mxu0 0
        %475 = vmatpush1.bf16.msra.mxu0 0
        %476 = vmatprep.subr.bf16.mxu0 0
        %477 = vmatpush1.bf16.msra.mxu0 0
        %478 = vmatprep.subr.bf16.mxu0 0
        %479 = vmatpush1.bf16.msra.mxu0 0
        %480 = vmatprep.subr.bf16.mxu0 0
        %481 = vmatpush1.bf16.msra.mxu0 0
        %482 = vmatprep.subr.bf16.mxu0 0
        %483 = vmatpush1.bf16.msra.mxu0 0
        %484 = vmatprep.subr.bf16.mxu0 0
        %485 = vmatpush1.bf16.msra.mxu0 0
        %486 = vmatprep.subr.bf16.mxu0 0
        %487 = vmatpush1.bf16.msra.mxu0 0
        %488 = vmatprep.subr.bf16.mxu0 0
        %489 = vmatpush1.bf16.msra.mxu0 0
        %490 = vmatprep.mubr.bf16.mxu0 0
        %491 = vmatmul.mubr.bf16.gmra.mrb[0].mxu0 %v409
        %v492 = vpop.f32.mrb[0].mxu0
        %v493 = vadd.f32 0.0, %v492
        %v494 = vpop.f32.mrb[0].mxu0
        %v495 = vpop.f32.mrb[0].mxu0
        %v496 = vadd.f32 0.0, %v495
        %v497 = vpop.f32.mrb[0].mxu0
        %498 = vdwg.mxu0
        %v499 = vpack.c.bf16 %v496, %v493
        %v516 = vunpack.c.l.b16 %v393
        %v517 = vunpack.c.l.b16 %v394
        %v518 = vunpack.c.l.b16 %v395
        %v519 = vunpack.c.l.b16 %v396
        %v520 = vunpack.c.l.b16 %v397
        %v521 = vunpack.c.l.b16 %v398
        %v522 = vunpack.c.l.b16 %v399
        %v523 = vunpack.c.l.b16 %v400
        %v524 = vunpack.c.l.b16 %v401
        %v525 = vunpack.c.l.b16 %v402
        %v526 = vunpack.c.l.b16 %v403
        %v527 = vunpack.c.l.b16 %v404
        %v528 = vunpack.c.l.b16 %v405
        %v529 = vunpack.c.l.b16 %v406
        %v530 = vunpack.c.l.b16 %v407
        %v531 = vunpack.c.l.b16 %v408
        %v532 = vpack.c.b16 %v517, %v516
        %v533 = vpack.c.b16 %v519, %v518
        %v534 = vpack.c.b16 %v521, %v520
        %v535 = vpack.c.b16 %v523, %v522
        %v536 = vpack.c.b16 %v525, %v524
        %v537 = vpack.c.b16 %v527, %v526
        %v538 = vpack.c.b16 %v529, %v528
        %v539 = vpack.c.b16 %v531, %v530
        %548 = vmatprep.subr.bf16.mxu0 0
        %549 = vmatpush1.bf16.msra.mxu0 %v532
        %550 = vmatprep.subr.bf16.mxu0 0
        %551 = vmatpush1.bf16.msra.mxu0 %v533
        %552 = vmatprep.subr.bf16.mxu0 0
        %553 = vmatpush1.bf16.msra.mxu0 %v534
        %554 = vmatprep.subr.bf16.mxu0 0
        %555 = vmatpush1.bf16.msra.mxu0 %v535
        %556 = vmatprep.subr.bf16.mxu0 0
        %557 = vmatpush1.bf16.msra.mxu0 %v536
        %558 = vmatprep.subr.bf16.mxu0 0
        %559 = vmatpush1.bf16.msra.mxu0 %v537
        %560 = vmatprep.subr.bf16.mxu0 0
        %561 = vmatpush1.bf16.msra.mxu0 %v538
        %562 = vmatprep.subr.bf16.mxu0 0
        %563 = vmatpush1.bf16.msra.mxu0 %v539
        %564 = vmatprep.subr.bf16.mxu0 0
        %565 = vmatpush1.bf16.msra.mxu0 0
        %566 = vmatprep.subr.bf16.mxu0 0
        %567 = vmatpush1.bf16.msra.mxu0 0
        %568 = vmatprep.subr.bf16.mxu0 0
        %569 = vmatpush1.bf16.msra.mxu0 0
        %570 = vmatprep.subr.bf16.mxu0 0
        %571 = vmatpush1.bf16.msra.mxu0 0
        %572 = vmatprep.subr.bf16.mxu0 0
        %573 = vmatpush1.bf16.msra.mxu0 0
        %574 = vmatprep.subr.bf16.mxu0 0
        %575 = vmatpush1.bf16.msra.mxu0 0
        %576 = vmatprep.subr.bf16.mxu0 0
        %577 = vmatpush1.bf16.msra.mxu0 0
        %578 = vmatprep.subr.bf16.mxu0 0
        %579 = vmatpush1.bf16.msra.mxu0 0
        %580 = vmatprep.mubr.bf16.mxu0 0
        %581 = vmatmul.mubr.bf16.gmra.mrb[0].mxu0 %v409
        %v582 = vpop.f32.mrb[0].mxu0
        %v583 = vadd.f32 0.0, %v582
        %v584 = vpop.f32.mrb[0].mxu0
        %v585 = vpop.f32.mrb[0].mxu0
        %v586 = vadd.f32 0.0, %v585
        %v587 = vpop.f32.mrb[0].mxu0
        %588 = vdwg.mxu0
        %v589 = vpack.c.bf16 %v586, %v583
        %v592 = vunpack.c.l.b16 %v369
        %v593 = vunpack.c.l.b16 %v370
        %v594 = vpack.c.b16 %v593, %v592
        %596 = vmatprep.subr.bf16.mxu0 0
        %597 = vmatpush1.bf16.msra.mxu0 %v442
        %598 = vmatprep.subr.bf16.mxu0 0
        %599 = vmatpush1.bf16.msra.mxu0 %v443
        %600 = vmatprep.subr.bf16.mxu0 0
        %601 = vmatpush1.bf16.msra.mxu0 %v444
        %602 = vmatprep.subr.bf16.mxu0 0
        %603 = vmatpush1.bf16.msra.mxu0 %v445
        %604 = vmatprep.subr.bf16.mxu0 0
        %605 = vmatpush1.bf16.msra.mxu0 %v446
        %606 = vmatprep.subr.bf16.mxu0 0
        %607 = vmatpush1.bf16.msra.mxu0 %v447
        %608 = vmatprep.subr.bf16.mxu0 0
        %609 = vmatpush1.bf16.msra.mxu0 %v448
        %610 = vmatprep.subr.bf16.mxu0 0
        %611 = vmatpush1.bf16.msra.mxu0 %v449
        %612 = vmatprep.subr.bf16.mxu0 0
        %613 = vmatpush1.bf16.msra.mxu0 0
        %614 = vmatprep.subr.bf16.mxu0 0
        %615 = vmatpush1.bf16.msra.mxu0 0
        %616 = vmatprep.subr.bf16.mxu0 0
        %617 = vmatpush1.bf16.msra.mxu0 0
        %618 = vmatprep.subr.bf16.mxu0 0
        %619 = vmatpush1.bf16.msra.mxu0 0
        %620 = vmatprep.subr.bf16.mxu0 0
        %621 = vmatpush1.bf16.msra.mxu0 0
        %622 = vmatprep.subr.bf16.mxu0 0
        %623 = vmatpush1.bf16.msra.mxu0 0
        %624 = vmatprep.subr.bf16.mxu0 0
        %625 = vmatpush1.bf16.msra.mxu0 0
        %626 = vmatprep.subr.bf16.mxu0 0
        %627 = vmatpush1.bf16.msra.mxu0 0
        %628 = vmatprep.mubr.bf16.mxu0 0
        %629 = vmatmul.mubr.bf16.gmra.mrb[0].mxu0 %v594
        %v630 = vpop.f32.mrb[0].mxu0
        %v631 = vadd.f32 0.0, %v630
        %v632 = vpop.f32.mrb[0].mxu0
        %v633 = vpop.f32.mrb[0].mxu0
        %v634 = vadd.f32 0.0, %v633
        %v635 = vpop.f32.mrb[0].mxu0
        %636 = vdwg.mxu0
        %v637 = vpack.c.bf16 %v634, %v631
        %638 = vmatprep.subr.bf16.mxu0 0
        %639 = vmatpush1.bf16.msra.mxu0 %v532
        %640 = vmatprep.subr.bf16.mxu0 0
        %641 = vmatpush1.bf16.msra.mxu0 %v533
        %642 = vmatprep.subr.bf16.mxu0 0
        %643 = vmatpush1.bf16.msra.mxu0 %v534
        %644 = vmatprep.subr.bf16.mxu0 0
        %645 = vmatpush1.bf16.msra.mxu0 %v535
        %646 = vmatprep.subr.bf16.mxu0 0
        %647 = vmatpush1.bf16.msra.mxu0 %v536
        %648 = vmatprep.subr.bf16.mxu0 0
        %649 = vmatpush1.bf16.msra.mxu0 %v537
        %650 = vmatprep.subr.bf16.mxu0 0
        %651 = vmatpush1.bf16.msra.mxu0 %v538
        %652 = vmatprep.subr.bf16.mxu0 0
        %653 = vmatpush1.bf16.msra.mxu0 %v539
        %654 = vmatprep.subr.bf16.mxu0 0
        %655 = vmatpush1.bf16.msra.mxu0 0
        %656 = vmatprep.subr.bf16.mxu0 0
        %657 = vmatpush1.bf16.msra.mxu0 0
        %658 = vmatprep.subr.bf16.mxu0 0
        %659 = vmatpush1.bf16.msra.mxu0 0
        %660 = vmatprep.subr.bf16.mxu0 0
        %661 = vmatpush1.bf16.msra.mxu0 0
        %662 = vmatprep.subr.bf16.mxu0 0
        %663 = vmatpush1.bf16.msra.mxu0 0
        %664 = vmatprep.subr.bf16.mxu0 0
        %665 = vmatpush1.bf16.msra.mxu0 0
        %666 = vmatprep.subr.bf16.mxu0 0
        %667 = vmatpush1.bf16.msra.mxu0 0
        %668 = vmatprep.subr.bf16.mxu0 0
        %669 = vmatpush1.bf16.msra.mxu0 0
        %670 = vmatprep.mubr.bf16.mxu0 0
        %671 = vmatmul.mubr.bf16.gmra.mrb[0].mxu0 %v594
        %v672 = vpop.f32.mrb[0].mxu0
        %v673 = vadd.f32 0.0, %v672
        %v674 = vpop.f32.mrb[0].mxu0
        %v675 = vpop.f32.mrb[0].mxu0
        %v676 = vadd.f32 0.0, %v675
        %v677 = vpop.f32.mrb[0].mxu0
        %678 = vdwg.mxu0
        %v679 = vpack.c.bf16 %v676, %v673
        %v682 = vunpack.c.l.b16 %v373
        %v683 = vunpack.c.l.b16 %v374
        %v684 = vpack.c.b16 %v683, %v682
        %686 = vmatprep.subr.bf16.mxu0 0
        %687 = vmatpush1.bf16.xpose.msra.mxu0 %v499
        %688 = vmatprep.subr.bf16.mxu0 0
        %689 = vmatpush1.bf16.xpose.msra.mxu0 0
        %690 = vmatprep.subr.bf16.mxu0 0
        %691 = vmatpush1.bf16.xpose.msra.mxu0 0
        %692 = vmatprep.subr.bf16.mxu0 0
        %693 = vmatpush1.bf16.xpose.msra.mxu0 0
        %694 = vmatprep.subr.bf16.mxu0 0
        %695 = vmatpush1.bf16.xpose.msra.mxu0 0
        %696 = vmatprep.subr.bf16.mxu0 0
        %697 = vmatpush1.bf16.xpose.msra.mxu0 0
        %698 = vmatprep.subr.bf16.mxu0 0
        %699 = vmatpush1.bf16.xpose.msra.mxu0 0
        %700 = vmatprep.subr.bf16.mxu0 0
        %701 = vmatpush1.bf16.xpose.msra.mxu0 0
        %702 = vmatprep.subr.bf16.mxu0 0
        %703 = vmatpush1.bf16.xpose.msra.mxu0 0
        %704 = vmatprep.subr.bf16.mxu0 0
        %705 = vmatpush1.bf16.xpose.msra.mxu0 0
        %706 = vmatprep.subr.bf16.mxu0 0
        %707 = vmatpush1.bf16.xpose.msra.mxu0 0
        %708 = vmatprep.subr.bf16.mxu0 0
        %709 = vmatpush1.bf16.xpose.msra.mxu0 0
        %710 = vmatprep.subr.bf16.mxu0 0
        %711 = vmatpush1.bf16.xpose.msra.mxu0 0
        %712 = vmatprep.subr.bf16.mxu0 0
        %713 = vmatpush1.bf16.xpose.msra.mxu0 0
        %714 = vmatprep.subr.bf16.mxu0 0
        %715 = vmatpush1.bf16.xpose.msra.mxu0 0
        %716 = vmatprep.subr.bf16.mxu0 0
        %717 = vmatpush1.bf16.xpose.msra.mxu0 0
        %718 = vmatprep.mubr.bf16.mxu0 0
        %719 = vmatmul.mubr.bf16.gmra.mrb[0].mxu0 %v684
        %v720 = vpop.f32.mrb[0].mxu0
        %v721 = vadd.f32 0.0, %v720
        %v722 = vpop.f32.mrb[0].mxu0
        %v723 = vpop.f32.mrb[0].mxu0
        %v724 = vadd.f32 0.0, %v723
        %v725 = vpop.f32.mrb[0].mxu0
        %726 = vdwg.mxu0
        %727 = vmatprep.subr.bf16.mxu0 0
        %728 = vmatpush1.bf16.xpose.msra.mxu0 %v637
        %729 = vmatprep.subr.bf16.mxu0 0
        %730 = vmatpush1.bf16.xpose.msra.mxu0 0
        %731 = vmatprep.subr.bf16.mxu0 0
        %732 = vmatpush1.bf16.xpose.msra.mxu0 0
        %733 = vmatprep.subr.bf16.mxu0 0
        %734 = vmatpush1.bf16.xpose.msra.mxu0 0
        %735 = vmatprep.subr.bf16.mxu0 0
        %736 = vmatpush1.bf16.xpose.msra.mxu0 0
        %737 = vmatprep.subr.bf16.mxu0 0
        %738 = vmatpush1.bf16.xpose.msra.mxu0 0
        %739 = vmatprep.subr.bf16.mxu0 0
        %740 = vmatpush1.bf16.xpose.msra.mxu0 0
        %741 = vmatprep.subr.bf16.mxu0 0
        %742 = vmatpush1.bf16.xpose.msra.mxu0 0
        %743 = vmatprep.subr.bf16.mxu0 0
        %744 = vmatpush1.bf16.xpose.msra.mxu0 0
        %745 = vmatprep.subr.bf16.mxu0 0
        %746 = vmatpush1.bf16.xpose.msra.mxu0 0
        %747 = vmatprep.subr.bf16.mxu0 0
        %748 = vmatpush1.bf16.xpose.msra.mxu0 0
        %749 = vmatprep.subr.bf16.mxu0 0
        %750 = vmatpush1.bf16.xpose.msra.mxu0 0
        %751 = vmatprep.subr.bf16.mxu0 0
        %752 = vmatpush1.bf16.xpose.msra.mxu0 0
        %753 = vmatprep.subr.bf16.mxu0 0
        %754 = vmatpush1.bf16.xpose.msra.mxu0 0
        %755 = vmatprep.subr.bf16.mxu0 0
        %756 = vmatpush1.bf16.xpose.msra.mxu0 0
        %757 = vmatprep.subr.bf16.mxu0 0
        %758 = vmatpush1.bf16.xpose.msra.mxu0 0
        %759 = vmatprep.mubr.bf16.mxu0 0
        %760 = vmatmul.mubr.bf16.gmra.mrb[0].mxu0 %v684
        %v761 = vpop.f32.mrb[0].mxu0
        %v762 = vadd.f32 0.0, %v761
        %v763 = vpop.f32.mrb[0].mxu0
        %v764 = vpop.f32.mrb[0].mxu0
        %v765 = vadd.f32 0.0, %v764
        %v766 = vpop.f32.mrb[0].mxu0
        %767 = vdwg.mxu0
        %vm768 = vcmask 130048
        %v769 = vsel %vm768, %v721, -inf
        %770 = vmax.xlane.f32.xlu0 %v769
        %v771 = vpop.xlane.xlu0 %770
        %v772 = vsel %vm768, %v724, -inf
        %773 = vmax.xlane.f32.xlu0 %v772
        %v774 = vpop.xlane.xlu0 %773
        %v775 = vsel %vm768, %v762, -inf
        %776 = vmax.xlane.f32.xlu0 %v775
        %v777 = vpop.xlane.xlu0 %776
        %v778 = vsel %vm768, %v765, -inf
        %779 = vmax.xlane.f32.xlu0 %v778
        %v780 = vpop.xlane.xlu0 %779
        %v781 = vmax.f32 %v771, %v777
        %v782 = vmax.f32 %v774, %v780
        %v783 = vsub.f32 %v721, %v781
        %v784 = vsub.f32 %v724, %v782
        %v785 = vmul.f32 %v783, 1.442695
        %v786 = vpow.pop %v785
        %v787 = vmul.f32 %v784, 1.442695
        %v788 = vpow.pop %v787
        %v789 = vsub.f32 %v762, %v781
        %v790 = vsub.f32 %v765, %v782
        %v791 = vmul.f32 %v789, 1.442695
        %v792 = vpow.pop %v791
        %v793 = vmul.f32 %v790, 1.442695
        %v794 = vpow.pop %v793
        %v795 = vsel %vm768, %v786, 0.0
        %796 = vadd.xlane.f32.xlu0 %v795
        %v797 = vpop.xlane.xlu0 %796
        %v798 = vsel %vm768, %v788, 0.0
        %799 = vadd.xlane.f32.xlu0 %v798
        %v800 = vpop.xlane.xlu0 %799
        %v801 = vsel %vm768, %v792, 0.0
        %802 = vadd.xlane.f32.xlu0 %v801
        %v803 = vpop.xlane.xlu0 %802
        %v804 = vsel %vm768, %v794, 0.0
        %805 = vadd.xlane.f32.xlu0 %v804
        %v806 = vpop.xlane.xlu0 %805
        %v807 = vadd.f32 %v797, %v803
        %v808 = vadd.f32 %v800, %v806
        %v809 = vrcp.pop %v807
        %v810 = vrcp.pop %v808
        %v811 = vpack.c.bf16 %v788, %v786
        %v812 = vpack.c.bf16 %v794, %v792
        %v814 = vsel %vm768, %v812, 0
        %816 = vmatprep.subr.bf16.mxu0 0
        %817 = vmatpush1.bf16.msra.mxu0 %v679
        %818 = vmatprep.subr.bf16.mxu0 0
        %819 = vmatpush1.bf16.msra.mxu0 0
        %820 = vmatprep.subr.bf16.mxu0 0
        %821 = vmatpush1.bf16.msra.mxu0 0
        %822 = vmatprep.subr.bf16.mxu0 0
        %823 = vmatpush1.bf16.msra.mxu0 0
        %824 = vmatprep.subr.bf16.mxu0 0
        %825 = vmatpush1.bf16.msra.mxu0 0
        %826 = vmatprep.subr.bf16.mxu0 0
        %827 = vmatpush1.bf16.msra.mxu0 0
        %828 = vmatprep.subr.bf16.mxu0 0
        %829 = vmatpush1.bf16.msra.mxu0 0
        %830 = vmatprep.subr.bf16.mxu0 0
        %831 = vmatpush1.bf16.msra.mxu0 0
        %832 = vmatprep.subr.bf16.mxu0 0
        %833 = vmatpush1.bf16.msra.mxu0 0
        %834 = vmatprep.subr.bf16.mxu0 0
        %835 = vmatpush1.bf16.msra.mxu0 0
        %836 = vmatprep.subr.bf16.mxu0 0
        %837 = vmatpush1.bf16.msra.mxu0 0
        %838 = vmatprep.subr.bf16.mxu0 0
        %839 = vmatpush1.bf16.msra.mxu0 0
        %840 = vmatprep.subr.bf16.mxu0 0
        %841 = vmatpush1.bf16.msra.mxu0 0
        %842 = vmatprep.subr.bf16.mxu0 0
        %843 = vmatpush1.bf16.msra.mxu0 0
        %844 = vmatprep.subr.bf16.mxu0 0
        %845 = vmatpush1.bf16.msra.mxu0 0
        %846 = vmatprep.subr.bf16.mxu0 0
        %847 = vmatpush1.bf16.msra.mxu0 0
        %848 = vmatprep.mubr.bf16.mxu0 0
        %849 = vmatmul.mubr.bf16.gmra.mrb[0].mxu0 %v814
        %v850 = vpop.f32.mrb[0].mxu0
        %v851 = vadd.f32 0.0, %v850
        %v852 = vpop.f32.mrb[0].mxu0
        %v853 = vpop.f32.mrb[0].mxu0
        %v854 = vadd.f32 0.0, %v853
        %v855 = vpop.f32.mrb[0].mxu0
        %856 = vdwg.mxu0
        %v858 = vsel %vm768, %v811, 0
        %860 = vmatprep.subr.bf16.mxu0 0
        %861 = vmatpush1.bf16.msra.mxu0 %v589
        %862 = vmatprep.subr.bf16.mxu0 0
        %863 = vmatpush1.bf16.msra.mxu0 0
        %864 = vmatprep.subr.bf16.mxu0 0
        %865 = vmatpush1.bf16.msra.mxu0 0
        %866 = vmatprep.subr.bf16.mxu0 0
        %867 = vmatpush1.bf16.msra.mxu0 0
        %868 = vmatprep.subr.bf16.mxu0 0
        %869 = vmatpush1.bf16.msra.mxu0 0
        %870 = vmatprep.subr.bf16.mxu0 0
        %871 = vmatpush1.bf16.msra.mxu0 0
        %872 = vmatprep.subr.bf16.mxu0 0
        %873 = vmatpush1.bf16.msra.mxu0 0
        %874 = vmatprep.subr.bf16.mxu0 0
        %875 = vmatpush1.bf16.msra.mxu0 0
        %876 = vmatprep.subr.bf16.mxu0 0
        %877 = vmatpush1.bf16.msra.mxu0 0
        %878 = vmatprep.subr.bf16.mxu0 0
        %879 = vmatpush1.bf16.msra.mxu0 0
        %880 = vmatprep.subr.bf16.mxu0 0
        %881 = vmatpush1.bf16.msra.mxu0 0
        %882 = vmatprep.subr.bf16.mxu0 0
        %883 = vmatpush1.bf16.msra.mxu0 0
        %884 = vmatprep.subr.bf16.mxu0 0
        %885 = vmatpush1.bf16.msra.mxu0 0
        %886 = vmatprep.subr.bf16.mxu0 0
        %887 = vmatpush1.bf16.msra.mxu0 0
        %888 = vmatprep.subr.bf16.mxu0 0
        %889 = vmatpush1.bf16.msra.mxu0 0
        %890 = vmatprep.subr.bf16.mxu0 0
        %891 = vmatpush1.bf16.msra.mxu0 0
        %892 = vmatprep.mubr.bf16.mxu0 0
        %893 = vmatmul.mubr.bf16.gmra.mrb[0].mxu0 %v858
        %v894 = vpop.f32.mrb[0].mxu0
        %v895 = vadd.f32 %v851, %v894
        %v896 = vpop.f32.mrb[0].mxu0
        %v897 = vpop.f32.mrb[0].mxu0
        %v898 = vadd.f32 %v854, %v897
        %v899 = vpop.f32.mrb[0].mxu0
        %900 = vdwg.mxu0
        %v901 = vmul.f32 %v895, %v809
        %v902 = vmul.f32 %v898, %v810
        %v903 = vmul.f32 %v375, %v371
        %v904 = vmul.f32 %v376, %v372
        %v905 = vsub.f32 1.0, %v375
        %v906 = vsub.f32 1.0, %v376
        %v907 = vmul.f32 %v905, %v901
        %v908 = vmul.f32 %v906, %v902
        %v909 = vadd.f32 %v903, %v907
        %v910 = vadd.f32 %v904, %v908
        %911 = vst [vmem:[%s367] sm:$0xff] %v909
        %912 = vst [vmem:[%s367 + $0x8] sm:$0xff] %v910
        %s913 = sand.u32 %s172, 1
        %s914 = scalar_lea.sflag [#allocation4], %s913
        %s915 = sand.u32 %s172, 1
        %s916 = smul.addr %s915, 16
        %s917 = scalar_lea.vmem [#allocation13], %s916
        // Predicated region
        $region69: #{tpu_custom_call.1} parent=43 // pred_check
          %p918 = pneg %p182
        $region70: #{tpu_custom_call.1} parent=43 // pred_check_branch
          %920 = sbr.rel (%p918) target = $region72
        $region71: #{tpu_custom_call.1} parent=43 // pred_region
          %s922 = ssub.s32 256, 256
          %923 = vsyncadd %s914, %s922
          %s924 = smul.addr %s28, 2
          %s925 = smul.addr %s924, 128
          %s926 = scalar_lea.hbm %s6, %s925
          %s927 = sshll.u32 %s917, 4
          %s928 = int_to_ptr.vmem [resolvable:$true] %s927
          %933 = dma.vmem_to_hbm [thread:$0]  %s928, 256, %s926, %s914, 128, 128, 8
        $region72: #{tpu_custom_call.1} parent=43 // pred_fallthru
          _
      $region44: #{tpu_custom_call.1} parent=5 // pred_fallthru
        _
      %p934 = scmp.le.s32.totalorder 2, %s23
      // Predicated region
      $region73: #{tpu_custom_call.1} parent=5 // pred_check
        %p935 = pneg %p934
      $region74: #{tpu_custom_call.1} parent=5 // pred_check_branch
        %937 = sbr.rel (%p935) target = $region76
      $region75: #{tpu_custom_call.1} parent=5 // pred_region
        %s938 = ssub.s32 %s23, 2
        // Predicated region
        $region77: #{tpu_custom_call.1} parent=75 // pred_check
          %p939 = pneg %p188
        $region78: #{tpu_custom_call.1} parent=75 // pred_check_branch
          %941 = sbr.rel (%p939) target = $region80
        $region79: #{tpu_custom_call.1} parent=75 // pred_region
          %s942 = sand.u32 %s173, 1
          %s943 = scalar_lea.sflag [#allocation4], %s942
          %s944 = sand.u32 %s173, 1
          %s945 = smul.addr %s944, 16
          %s946 = scalar_lea.vmem [#allocation13], %s945
          %947 = dma.done %s943, 256
        $region80: #{tpu_custom_call.1} parent=75 // pred_fallthru
          _
      $region76: #{tpu_custom_call.1} parent=5 // pred_fallthru
        _
    $region6: #{tpu_custom_call.1} parent=1 // loop_footer
      %s27 = sadd.s32 1, %s23
    $region7: #{tpu_custom_call.1} parent=1 // loop_footer_branch
      %22 = sbr.rel target = $region3
    $region8: #{tpu_custom_call.1} parent=1 // loop_exit
      _
    %948 = vsyncpa [#allocation3], 1
    %s949 = scalar_lea.sflag [#allocation3], 1
    %950 = vsyncpa %s949, 1
    %951 = vsyncpa [#allocation6], 1
    %s952 = scalar_lea.sflag [#allocation6], 1
    %953 = vsyncpa %s952, 1
    %954 = vsyncpa [#allocation9], 1
    %955 = vsyncpa [#allocation12], 1
    %956 = vsyncpa [#allocation4], 1
    %s957 = scalar_lea.sflag [#allocation4], 1
    %958 = vsyncpa %s957, 1

</llo_original>
